<compile_context>
chip_gen: v5e
topology: v5e:2x2
jax: 0.10.0
libtpu: 0.0.40
codegen_flags: <defaults>
</compile_context>

<pallas_src>
import functools

import jax
import jax.numpy as jnp
from jax.experimental import pallas as pl
from jax.experimental.pallas import tpu as pltpu


def _round_up(x: int, m: int) -> int:
    return (x + m - 1) // m * m


def _round_down(x: int, m: int) -> int:
    return max(m, (x // m) * m)


def _next_pow2(x: int) -> int:
    return 1 << max(0, int(x - 1).bit_length())


# -----------------------------------------------------------------------------
# Kernels
# -----------------------------------------------------------------------------
def _mlp_kernel_resident(x_ref, w_ref, b_ref, o_ref, *, residual, matmul_dtype):
    """1-D grid over row tiles; the whole (Dp, Dp) weight stays resident."""
    x = x_ref[...]                                    # (tile_n, Dp)
    w = w_ref[...]                                    # (Dp, Dp)
    if matmul_dtype is not None:
        x = x.astype(matmul_dtype)
        w = w.astype(matmul_dtype)
    h = jnp.dot(x, w, preferred_element_type=jnp.float32) + b_ref[...]
    h = jnp.maximum(h, 0.0)
    # TODO(synk): training-mode dropout omitted - inference (identity) semantics.
    if residual:
        h = x_ref[...].astype(jnp.float32) + h        # re-read: short live range
    o_ref[...] = h.astype(o_ref.dtype)


def _mlp_kernel_slab(x_ref, w_ref, b_ref, o_ref, *, residual, td, matmul_dtype):
    """2-D grid (row tiles x output-column slabs) for large D."""
    x = x_ref[...]                                    # (tile_n, Dp)
    w = w_ref[...]                                    # (Dp, td)
    if matmul_dtype is not None:
        x = x.astype(matmul_dtype)
        w = w.astype(matmul_dtype)
    h = jnp.dot(x, w, preferred_element_type=jnp.float32) + b_ref[...]
    h = jnp.maximum(h, 0.0)
    # TODO(synk): training-mode dropout omitted - inference (identity) semantics.
    if residual:
        col0 = pl.multiple_of(pl.program_id(1) * td, 128)
        h = x_ref[:, pl.ds(col0, td)].astype(jnp.float32) + h
    o_ref[...] = h.astype(o_ref.dtype)


# -----------------------------------------------------------------------------
# Wrapper
# -----------------------------------------------------------------------------
def mlp_layer_forward(x, w, b, *, residual=True, tile_n=None, tile_dn=None,
                      matmul_dtype=None):
    """x: (N, D) node features; w: (D, D) in->out weight; b: (D,) bias."""
    N, D = x.shape
    assert w.shape == (D, D) and b.shape == (D,)
    itemsize = jnp.dtype(x.dtype).itemsize

    # ---- lane-dense feature padding only when D is not a 128 multiple -------
    Dp = _round_up(D, 128)
    if Dp != D:
        x_k = jnp.pad(x, ((0, 0), (0, Dp - D)))
        w_k = jnp.pad(w, ((0, Dp - D), (0, Dp - D)))
        b_k = jnp.pad(b, (0, Dp - D))
    else:
        x_k, w_k, b_k = x, w, b
    b_k = b_k.reshape(1, Dp)

    # ---- per-generation VMEM budget ------------------------------------------
    try:
        vmem_cap = int(getattr(pltpu.get_tpu_info(), "vmem_capacity_bytes",
                               64 << 20))
    except Exception:  # keep the wrapper robust if the HW query is unavailable
        vmem_cap = 64 << 20
    vmem_budget = (vmem_cap * 3) // 4             # headroom for Mosaic scratch
    slack = 4 << 20

    # ---- row tile: move ~2 MiB of x per grid step ----------------------------
    if tile_n is None:
        tile_n = _next_pow2(max(1, (2 << 20) // max(1, Dp * itemsize)))
        tile_n = max(512, min(4096, tile_n))
    tile_n = _round_down(min(_round_up(tile_n, 128), _round_up(N, 128)), 128)

    def _fits(tn, td_):
        need = (2 * tn * Dp + 2 * Dp * td_ + 2 * tn * td_ + 2 * td_) * itemsize
        return need + slack <= vmem_budget

    # ---- resident-weight fast path -------------------------------------------
    w_budget = max(4 << 20, min(vmem_budget // 6, 32 << 20))
    resident_w = (tile_dn is None
                  and Dp * Dp * itemsize <= w_budget
                  and _fits(128, Dp))

    if resident_w:
        td = Dp
    else:
        td = _round_down(min(Dp, _round_up(max(tile_dn or 512, 128), 128)), 128)
        while Dp % td:                 # Dp % 128 == 0 -> terminates at td >= 128
            td -= 128
        # shrink the weight slab until its double-buffer fits the budget
        while td > 128 and not _fits(128, td):
            td -= 128
            while Dp % td:
                td -= 128

    # shrink the row tile until the double-buffered working set fits
    while tile_n > 128 and not _fits(tile_n, td):
        tile_n = _round_down(tile_n // 2, 128)

    need = (2 * tile_n * Dp + 2 * Dp * td + 2 * tile_n * td + 2 * td) * itemsize
    vmem_limit = int(min(max(need + slack, 32 << 20), vmem_budget))

    n_row_tiles = pl.cdiv(N, tile_n)
    w_passes = 1 if resident_w else n_row_tiles
    cost = pl.CostEstimate(
        flops=2 * N * Dp * Dp,
        transcendentals=0,
        bytes_accessed=(2 * N * Dp + w_passes * Dp * Dp + Dp) * itemsize,
    )

    if resident_w:
        kernel = functools.partial(_mlp_kernel_resident, residual=residual,
                                   matmul_dtype=matmul_dtype)
        grid = (n_row_tiles,)
        in_specs = [
            pl.BlockSpec((tile_n, Dp), lambda i: (i, 0)),   # x row tile
            pl.BlockSpec((Dp, Dp), lambda i: (0, 0)),       # W (resident)
            pl.BlockSpec((1, Dp), lambda i: (0, 0)),        # bias (resident)
        ]
        out_specs = pl.BlockSpec((tile_n, Dp), lambda i: (i, 0))
        dim_sem = ("parallel",)
    else:
        kernel = functools.partial(_mlp_kernel_slab, residual=residual,
                                   td=td, matmul_dtype=matmul_dtype)
        grid = (n_row_tiles, Dp // td)
        in_specs = [
            pl.BlockSpec((tile_n, Dp), lambda i, j: (i, 0)),  # x tile, resident over j
            pl.BlockSpec((Dp, td), lambda i, j: (0, j)),      # W column slab
            pl.BlockSpec((1, td), lambda i, j: (0, j)),       # bias slab
        ]
        out_specs = pl.BlockSpec((tile_n, td), lambda i, j: (i, j))
        # rows -> megacore parallel; columns sequential so the x row tile is
        # revisited (not re-fetched) across the j sweep.
        dim_sem = ("parallel", "arbitrary")

    out = pl.pallas_call(
        kernel,
        out_shape=jax.ShapeDtypeStruct((N, Dp), x.dtype),
        grid_spec=pltpu.PrefetchScalarGridSpec(
            num_scalar_prefetch=0,
            grid=grid,
            in_specs=in_specs,
            out_specs=out_specs,
        ),
        compiler_params=pltpu.CompilerParams(
            dimension_semantics=dim_sem,
            vmem_limit_bytes=vmem_limit),
        cost_estimate=cost,
    )(x_k, w_k, b_k)

    return out if Dp == D else out[:, :D]


def reference_forward(x, w, b, residual=True):
    h = jnp.maximum(x @ w + b, 0.0)
    return x + h if residual else h


if __name__ == "__main__":
    # Deterministic small example: N=1000 nodes (not a tile multiple, exercises
    # the ragged last row block), dim_in=96 (not a 128 multiple, exercises the
    # lane-dense feature padding).
    key = jax.random.PRNGKey(0)
    kx, kw, kb = jax.random.split(key, 3)
    N, D = 1000, 96
    x = jax.random.normal(kx, (N, D), dtype=jnp.float32)
    # Parameter shapes from __init__: pyg_nn.Linear(dim_in, dim_in)
    #   -> weight stored (in, out) = (D, D), bias (D,)
    w = jax.random.normal(kw, (D, D), dtype=jnp.float32) * (1.0 / jnp.sqrt(D))
    b = jax.random.normal(kb, (D,), dtype=jnp.float32) * 0.01

    out = mlp_layer_forward(x, w, b, residual=True)
    jax.block_until_ready(out)

    ref = reference_forward(x, w, b, residual=True)
    assert out.shape == (N, D)
    assert jnp.allclose(out, ref, atol=1e-4, rtol=1e-4)
    print("KERNEL_OK")
</pallas_src>

<mosaic_0001>
module attributes {stable_mosaic.version = 11 : i64} {
  func.func @_mlp_kernel_resident(%arg0: i32, %arg1: memref<1024x128xf32, #tpu.memory_space<vmem>>, %arg2: memref<128x128xf32, #tpu.memory_space<vmem>>, %arg3: memref<1x128xf32, #tpu.memory_space<vmem>>, %arg4: memref<1024x128xf32, #tpu.memory_space<vmem>>) attributes {dimension_semantics = [#tpu.dimension_semantics<parallel>], iteration_bounds = array<i64: 1>, scalar_prefetch = 0 : i64, scratch_operands = 0 : i64, tpu.core_type = #tpu.core_type<tc>, window_params = [{transform_indices = @transform_0, window_bounds = array<i64: 1024, 128>}, {pipeline_mode = #tpu.pipeline_mode<synchronous>, transform_indices = @transform_1, window_bounds = array<i64: 128, 128>}, {pipeline_mode = #tpu.pipeline_mode<synchronous>, transform_indices = @transform_2, window_bounds = array<i64: 1, 128>}, {transform_indices = @transform_3, window_bounds = array<i64: 1024, 128>}]} {
    %c0 = arith.constant 0 : index
    %c0_0 = arith.constant 0 : index
    %0 = vector.load %arg1[%c0, %c0_0] : memref<1024x128xf32, #tpu.memory_space<vmem>>, vector<1024x128xf32>
    %c0_1 = arith.constant 0 : index
    %c0_2 = arith.constant 0 : index
    %1 = vector.load %arg2[%c0_1, %c0_2] : memref<128x128xf32, #tpu.memory_space<vmem>>, vector<128x128xf32>
    %cst = arith.constant dense<0.000000e+00> : vector<1024x128xf32>
    %2 = tpu.matmul %0, %1, %cst {dimension_numbers = #tpu.dot_dimension_numbers<[1], [0], [0], [1], [0, 0, 1, 1], [], []>} : vector<1024x128xf32>, vector<128x128xf32>, vector<1024x128xf32> -> vector<1024x128xf32>
    %c0_3 = arith.constant 0 : index
    %c0_4 = arith.constant 0 : index
    %3 = vector.load %arg3[%c0_3, %c0_4] : memref<1x128xf32, #tpu.memory_space<vmem>>, vector<1x128xf32>
    %4 = vector.broadcast %3 : vector<1x128xf32> to vector<1024x128xf32>
    %5 = arith.addf %2, %4 : vector<1024x128xf32>
    %cst_5 = arith.constant 0.000000e+00 : f32
    %6 = vector.broadcast %cst_5 : f32 to vector<1024x128xf32>
    %7 = arith.maximumf %5, %6 : vector<1024x128xf32>
    %c0_6 = arith.constant 0 : index
    %c0_7 = arith.constant 0 : index
    %8 = vector.load %arg1[%c0_6, %c0_7] : memref<1024x128xf32, #tpu.memory_space<vmem>>, vector<1024x128xf32>
    %9 = arith.addf %8, %7 : vector<1024x128xf32>
    %c0_8 = arith.constant 0 : index
    %c0_9 = arith.constant 0 : index
    %10 = vector.load %arg4[%c0_8, %c0_9] : memref<1024x128xf32, #tpu.memory_space<vmem>>, vector<1024x128xf32>
    tpu.vector_store %arg4[%c0_8, %c0_9], %9 {strides = array<i32>} : memref<1024x128xf32, #tpu.memory_space<vmem>>, vector<1024x128xf32>,
    return
  }
  func.func @transform_0(%arg0: i32) -> (i32, i32) {
    %c0_i32 = arith.constant 0 : i32
    %c0_i32_0 = arith.constant 0 : i32
    return %arg0, %c0_i32 : i32, i32
  }
  func.func @transform_1(%arg0: i32) -> (i32, i32) {
    %c0_i32 = arith.constant 0 : i32
    %c0_i32_0 = arith.constant 0 : i32
    %c0_i32_1 = arith.constant 0 : i32
    return %c0_i32, %c0_i32_0 : i32, i32
  }
  func.func @transform_2(%arg0: i32) -> (i32, i32) {
    %c0_i32 = arith.constant 0 : i32
    %c0_i32_0 = arith.constant 0 : i32
    %c0_i32_1 = arith.constant 0 : i32
    return %c0_i32, %c0_i32_0 : i32, i32
  }
  func.func @transform_3(%arg0: i32) -> (i32, i32) {
    %c0_i32 = arith.constant 0 : i32
    %c0_i32_0 = arith.constant 0 : i32
    return %arg0, %c0_i32 : i32, i32
  }
}

</mosaic_0001>

<llo_original>
// kernel: tpu_custom_call.1
$region0: #{tpu_custom_call.1}
  #allocation0 [shape = 'u32[]', space=smem, size = 0x4, offset = 0x4, fixed_abs, tag = 'smem constant byte address 0x4 - core index']
  #allocation1 [shape = 'u32[72,128]{1,0:T(1,128)}', space=vmem, size = 0x9000, scoped, tag = 'internal scratch']
  %s0 = inlined_call_operand.hbm [shape: f32[1000,128], index: 0, kind: input, shape index: {}]
  %s1 = inlined_call_operand.hbm [shape: f32[128,128], index: 1, kind: input, shape index: {}]
  %s2 = inlined_call_operand.vmem [shape: f32[1,128], index: 2, kind: input, shape index: {}]
  %s3 = inlined_call_operand.hbm [shape: f32[1000,128], index: 3, kind: output, shape index: {}]
  %s4 = sld [smem:[#allocation0]]
  $region30: #{tpu_custom_call.1} parent=0
    _
  %s6 = ssub.s32 1, %s4
  %s7 = scalar_select 0, %s6, %s4
  $region1: #{tpu_custom_call.1} parent=0
    #allocation2 [shape = 'u8[524288]{0}', space=vmem, size = 0x80000, scoped, tag = 'input window, operand 0, single buffered']
    #allocation3 [shape = 's32[1]{0}', space=sflag, size = 0x4, scoped, tag = 'scoped memory for tpu_custom_call.1']
    #allocation4 [shape = 's32[1]{0}', space=sflag, size = 0x4, scoped, tag = 'scoped memory for tpu_custom_call.1']
    #allocation5 [shape = 'u8[65536]{0}', space=vmem, size = 0x10000, scoped, tag = 'input window, operand 1, single buffered']
    #allocation6 [shape = 's32[1]{0}', space=sflag, size = 0x4, scoped, tag = 'scoped memory for tpu_custom_call.1']
    #allocation7 [shape = 'u8[524288]{0}', space=vmem, size = 0x80000, scoped, tag = 'output window, operand 0, single buffered']
    %8 = vsyncpa [#allocation3], 0
    %9 = vsyncpa [#allocation6], 0
    %10 = vsyncpa [#allocation4], 0
    // Predicated region
    $region2: #{tpu_custom_call.1} parent=1 // pred_check
      _
    $region3: #{tpu_custom_call.1} parent=1 // pred_check_branch
      %12 = sbr.rel (0) target = $region5
    $region4: #{tpu_custom_call.1} parent=1 // pred_region
      %14 = vsyncadd [#allocation3], 384
      %s15 = sshll.u32 %s0, 4
      %s16 = int_to_ptr.hbm [resolvable:$true] %s15
      %s17 = sshll.u32 [#allocation2], 4
      %s18 = int_to_ptr.vmem [resolvable:$true] %s17
      %23 = dma.hbm_to_vmem [thread:$0]  %s16, 16000, %s18, [#allocation3], 128, 128, 8
    $region5: #{tpu_custom_call.1} parent=1 // pred_fallthru
      _
    // Predicated region
    $region6: #{tpu_custom_call.1} parent=1 // pred_check
      _
    $region7: #{tpu_custom_call.1} parent=1 // pred_check_branch
      %25 = sbr.rel (0) target = $region9
    $region8: #{tpu_custom_call.1} parent=1 // pred_region
      %27 = vsyncadd [#allocation6], 0
      %s28 = sshll.u32 %s1, 4
      %s29 = int_to_ptr.hbm [resolvable:$true] %s28
      %s30 = sshll.u32 [#allocation5], 4
      %s31 = int_to_ptr.vmem [resolvable:$true] %s30
      %36 = dma.hbm_to_vmem [thread:$0]  %s29, 2048, %s31, [#allocation6], 128, 128, 8
    $region9: #{tpu_custom_call.1} parent=1 // pred_fallthru
      _
    // Predicated region
    $region10: #{tpu_custom_call.1} parent=1 // pred_check
      _
    $region11: #{tpu_custom_call.1} parent=1 // pred_check_branch
      %38 = sbr.rel (0) target = $region13
    $region12: #{tpu_custom_call.1} parent=1 // pred_region
      _
    $region13: #{tpu_custom_call.1} parent=1 // pred_fallthru
      _
    // Predicated region
    $region14: #{tpu_custom_call.1} parent=1 // pred_check
      _
    $region15: #{tpu_custom_call.1} parent=1 // pred_check_branch
      %40 = sbr.rel (0) target = $region17
    $region16: #{tpu_custom_call.1} parent=1 // pred_region
      %42 = dma.done [#allocation3], 16384
    $region17: #{tpu_custom_call.1} parent=1 // pred_fallthru
      _
    // Predicated region
    $region18: #{tpu_custom_call.1} parent=1 // pred_check
      _
    $region19: #{tpu_custom_call.1} parent=1 // pred_check_branch
      %44 = sbr.rel (0) target = $region21
    $region20: #{tpu_custom_call.1} parent=1 // pred_region
      %46 = dma.done [#allocation6], 2048
    $region21: #{tpu_custom_call.1} parent=1 // pred_fallthru
      _
    %v47 = vld [vmem:[#allocation2] sm:$0xff]
    %v48 = vld [vmem:[#allocation2 + $0x8] sm:$0xff]
    %v49 = vld [vmem:[#allocation2 + $0x10] sm:$0xff]
    %v50 = vld [vmem:[#allocation2 + $0x18] sm:$0xff]
    %v51 = vld [vmem:[#allocation2 + $0x20] sm:$0xff]
    %v52 = vld [vmem:[#allocation2 + $0x28] sm:$0xff]
    %v53 = vld [vmem:[#allocation2 + $0x30] sm:$0xff]
    %v54 = vld [vmem:[#allocation2 + $0x38] sm:$0xff]
    %v55 = vld [vmem:[#allocation2 + $0x40] sm:$0xff]
    %v56 = vld [vmem:[#allocation2 + $0x48] sm:$0xff]
    %v57 = vld [vmem:[#allocation2 + $0x50] sm:$0xff]
    %v58 = vld [vmem:[#allocation2 + $0x58] sm:$0xff]
    %v59 = vld [vmem:[#allocation2 + $0x60] sm:$0xff]
    %v60 = vld [vmem:[#allocation2 + $0x68] sm:$0xff]
    %v61 = vld [vmem:[#allocation2 + $0x70] sm:$0xff]
    %v62 = vld [vmem:[#allocation2 + $0x78] sm:$0xff]
    %v63 = vld [vmem:[#allocation2 + $0x80] sm:$0xff]
    %v64 = vld [vmem:[#allocation2 + $0x88] sm:$0xff]
    %v65 = vld [vmem:[#allocation2 + $0x90] sm:$0xff]
    %v66 = vld [vmem:[#allocation2 + $0x98] sm:$0xff]
    %v67 = vld [vmem:[#allocation2 + $0xa0] sm:$0xff]
    %v68 = vld [vmem:[#allocation2 + $0xa8] sm:$0xff]
    %v69 = vld [vmem:[#allocation2 + $0xb0] sm:$0xff]
    %v70 = vld [vmem:[#allocation2 + $0xb8] sm:$0xff]
    %v71 = vld [vmem:[#allocation2 + $0xc0] sm:$0xff]
    %v72 = vld [vmem:[#allocation2 + $0xc8] sm:$0xff]
    %v73 = vld [vmem:[#allocation2 + $0xd0] sm:$0xff]
    %v74 = vld [vmem:[#allocation2 + $0xd8] sm:$0xff]
    %v75 = vld [vmem:[#allocation2 + $0xe0] sm:$0xff]
    %v76 = vld [vmem:[#allocation2 + $0xe8] sm:$0xff]
    %v77 = vld [vmem:[#allocation2 + $0xf0] sm:$0xff]
    %v78 = vld [vmem:[#allocation2 + $0xf8] sm:$0xff]
    %v79 = vld [vmem:[#allocation2 + $0x100] sm:$0xff]
    %v80 = vld [vmem:[#allocation2 + $0x108] sm:$0xff]
    %v81 = vld [vmem:[#allocation2 + $0x110] sm:$0xff]
    %v82 = vld [vmem:[#allocation2 + $0x118] sm:$0xff]
    %v83 = vld [vmem:[#allocation2 + $0x120] sm:$0xff]
    %v84 = vld [vmem:[#allocation2 + $0x128] sm:$0xff]
    %v85 = vld [vmem:[#allocation2 + $0x130] sm:$0xff]
    %v86 = vld [vmem:[#allocation2 + $0x138] sm:$0xff]
    %v87 = vld [vmem:[#allocation2 + $0x140] sm:$0xff]
    %v88 = vld [vmem:[#allocation2 + $0x148] sm:$0xff]
    %v89 = vld [vmem:[#allocation2 + $0x150] sm:$0xff]
    %v90 = vld [vmem:[#allocation2 + $0x158] sm:$0xff]
    %v91 = vld [vmem:[#allocation2 + $0x160] sm:$0xff]
    %v92 = vld [vmem:[#allocation2 + $0x168] sm:$0xff]
    %v93 = vld [vmem:[#allocation2 + $0x170] sm:$0xff]
    %v94 = vld [vmem:[#allocation2 + $0x178] sm:$0xff]
    %v95 = vld [vmem:[#allocation2 + $0x180] sm:$0xff]
    %v96 = vld [vmem:[#allocation2 + $0x188] sm:$0xff]
    %v97 = vld [vmem:[#allocation2 + $0x190] sm:$0xff]
    %v98 = vld [vmem:[#allocation2 + $0x198] sm:$0xff]
    %v99 = vld [vmem:[#allocation2 + $0x1a0] sm:$0xff]
    %v100 = vld [vmem:[#allocation2 + $0x1a8] sm:$0xff]
    %v101 = vld [vmem:[#allocation2 + $0x1b0] sm:$0xff]
    %v102 = vld [vmem:[#allocation2 + $0x1b8] sm:$0xff]
    %v103 = vld [vmem:[#allocation2 + $0x1c0] sm:$0xff]
    %v104 = vld [vmem:[#allocation2 + $0x1c8] sm:$0xff]
    %v105 = vld [vmem:[#allocation2 + $0x1d0] sm:$0xff]
    %v106 = vld [vmem:[#allocation2 + $0x1d8] sm:$0xff]
    %v107 = vld [vmem:[#allocation2 + $0x1e0] sm:$0xff]
    %v108 = vld [vmem:[#allocation2 + $0x1e8] sm:$0xff]
    %v109 = vld [vmem:[#allocation2 + $0x1f0] sm:$0xff]
    %v110 = vld [vmem:[#allocation2 + $0x1f8] sm:$0xff]
    %v111 = vld [vmem:[#allocation2 + $0x200] sm:$0xff]
    %v112 = vld [vmem:[#allocation2 + $0x208] sm:$0xff]
    %v113 = vld [vmem:[#allocation2 + $0x210] sm:$0xff]
    %v114 = vld [vmem:[#allocation2 + $0x218] sm:$0xff]
    %v115 = vld [vmem:[#allocation2 + $0x220] sm:$0xff]
    %v116 = vld [vmem:[#allocation2 + $0x228] sm:$0xff]
    %v117 = vld [vmem:[#allocation2 + $0x230] sm:$0xff]
    %v118 = vld [vmem:[#allocation2 + $0x238] sm:$0xff]
    %v119 = vld [vmem:[#allocation2 + $0x240] sm:$0xff]
    %v120 = vld [vmem:[#allocation2 + $0x248] sm:$0xff]
    %v121 = vld [vmem:[#allocation2 + $0x250] sm:$0xff]
    %v122 = vld [vmem:[#allocation2 + $0x258] sm:$0xff]
    %v123 = vld [vmem:[#allocation2 + $0x260] sm:$0xff]
    %v124 = vld [vmem:[#allocation2 + $0x268] sm:$0xff]
    %v125 = vld [vmem:[#allocation2 + $0x270] sm:$0xff]
    %v126 = vld [vmem:[#allocation2 + $0x278] sm:$0xff]
    %v127 = vld [vmem:[#allocation2 + $0x280] sm:$0xff]
    %v128 = vld [vmem:[#allocation2 + $0x288] sm:$0xff]
    %v129 = vld [vmem:[#allocation2 + $0x290] sm:$0xff]
    %v130 = vld [vmem:[#allocation2 + $0x298] sm:$0xff]
    %v131 = vld [vmem:[#allocation2 + $0x2a0] sm:$0xff]
    %v132 = vld [vmem:[#allocation2 + $0x2a8] sm:$0xff]
    %v133 = vld [vmem:[#allocation2 + $0x2b0] sm:$0xff]
    %v134 = vld [vmem:[#allocation2 + $0x2b8] sm:$0xff]
    %v135 = vld [vmem:[#allocation2 + $0x2c0] sm:$0xff]
    %v136 = vld [vmem:[#allocation2 + $0x2c8] sm:$0xff]
    %v137 = vld [vmem:[#allocation2 + $0x2d0] sm:$0xff]
    %v138 = vld [vmem:[#allocation2 + $0x2d8] sm:$0xff]
    %v139 = vld [vmem:[#allocation2 + $0x2e0] sm:$0xff]
    %v140 = vld [vmem:[#allocation2 + $0x2e8] sm:$0xff]
    %v141 = vld [vmem:[#allocation2 + $0x2f0] sm:$0xff]
    %v142 = vld [vmem:[#allocation2 + $0x2f8] sm:$0xff]
    %v143 = vld [vmem:[#allocation2 + $0x300] sm:$0xff]
    %v144 = vld [vmem:[#allocation2 + $0x308] sm:$0xff]
    %v145 = vld [vmem:[#allocation2 + $0x310] sm:$0xff]
    %v146 = vld [vmem:[#allocation2 + $0x318] sm:$0xff]
    %v147 = vld [vmem:[#allocation2 + $0x320] sm:$0xff]
    %v148 = vld [vmem:[#allocation2 + $0x328] sm:$0xff]
    %v149 = vld [vmem:[#allocation2 + $0x330] sm:$0xff]
    %v150 = vld [vmem:[#allocation2 + $0x338] sm:$0xff]
    %v151 = vld [vmem:[#allocation2 + $0x340] sm:$0xff]
    %v152 = vld [vmem:[#allocation2 + $0x348] sm:$0xff]
    %v153 = vld [vmem:[#allocation2 + $0x350] sm:$0xff]
    %v154 = vld [vmem:[#allocation2 + $0x358] sm:$0xff]
    %v155 = vld [vmem:[#allocation2 + $0x360] sm:$0xff]
    %v156 = vld [vmem:[#allocation2 + $0x368] sm:$0xff]
    %v157 = vld [vmem:[#allocation2 + $0x370] sm:$0xff]
    %v158 = vld [vmem:[#allocation2 + $0x378] sm:$0xff]
    %v159 = vld [vmem:[#allocation2 + $0x380] sm:$0xff]
    %v160 = vld [vmem:[#allocation2 + $0x388] sm:$0xff]
    %v161 = vld [vmem:[#allocation2 + $0x390] sm:$0xff]
    %v162 = vld [vmem:[#allocation2 + $0x398] sm:$0xff]
    %v163 = vld [vmem:[#allocation2 + $0x3a0] sm:$0xff]
    %v164 = vld [vmem:[#allocation2 + $0x3a8] sm:$0xff]
    %v165 = vld [vmem:[#allocation2 + $0x3b0] sm:$0xff]
    %v166 = vld [vmem:[#allocation2 + $0x3b8] sm:$0xff]
    %v167 = vld [vmem:[#allocation2 + $0x3c0] sm:$0xff]
    %v168 = vld [vmem:[#allocation2 + $0x3c8] sm:$0xff]
    %v169 = vld [vmem:[#allocation2 + $0x3d0] sm:$0xff]
    %v170 = vld [vmem:[#allocation2 + $0x3d8] sm:$0xff]
    %v171 = vld [vmem:[#allocation2 + $0x3e0] sm:$0xff]
    %v172 = vld [vmem:[#allocation2 + $0x3e8] sm:$0xff]
    %v173 = vld [vmem:[#allocation2 + $0x3f0] sm:$0xff]
    %v174 = vld [vmem:[#allocation2 + $0x3f8] sm:$0xff]
    %v175 = vld [vmem:[#allocation5] sm:$0xff]
    %v176 = vld [vmem:[#allocation5 + $0x8] sm:$0xff]
    %v177 = vld [vmem:[#allocation5 + $0x10] sm:$0xff]
    %v178 = vld [vmem:[#allocation5 + $0x18] sm:$0xff]
    %v179 = vld [vmem:[#allocation5 + $0x20] sm:$0xff]
    %v180 = vld [vmem:[#allocation5 + $0x28] sm:$0xff]
    %v181 = vld [vmem:[#allocation5 + $0x30] sm:$0xff]
    %v182 = vld [vmem:[#allocation5 + $0x38] sm:$0xff]
    %v183 = vld [vmem:[#allocation5 + $0x40] sm:$0xff]
    %v184 = vld [vmem:[#allocation5 + $0x48] sm:$0xff]
    %v185 = vld [vmem:[#allocation5 + $0x50] sm:$0xff]
    %v186 = vld [vmem:[#allocation5 + $0x58] sm:$0xff]
    %v187 = vld [vmem:[#allocation5 + $0x60] sm:$0xff]
    %v188 = vld [vmem:[#allocation5 + $0x68] sm:$0xff]
    %v189 = vld [vmem:[#allocation5 + $0x70] sm:$0xff]
    %v190 = vld [vmem:[#allocation5 + $0x78] sm:$0xff]
    %v191 = vld [vmem:[%s2] sm:$0x1]
    %v193 = vperm.slane %v191, 0
    %195 = vmatpush.msra.mxu0 %v190
    %196 = vmatpush.msra.mxu0 %v189
    %197 = vmatpush.msra.mxu0 %v188
    %198 = vmatpush.msra.mxu0 %v187
    %199 = vmatpush.msra.mxu0 %v186
    %200 = vmatpush.msra.mxu0 %v185
    %201 = vmatpush.msra.mxu0 %v184
    %202 = vmatpush.msra.mxu0 %v183
    %203 = vmatpush.msra.mxu0 %v182
    %204 = vmatpush.msra.mxu0 %v181
    %205 = vmatpush.msra.mxu0 %v180
    %206 = vmatpush.msra.mxu0 %v179
    %207 = vmatpush.msra.mxu0 %v178
    %208 = vmatpush.msra.mxu0 %v177
    %209 = vmatpush.msra.mxu0 %v176
    %210 = vmatpush.msra.mxu0 %v175
    %211 = vmatmul.f32.gmra.mxu0 %v47
    %v212 = vpop.f32.mrf.mxu0
    %v213 = vadd.f32 %v193, %v212
    %214 = vmatmul.f32.gmra.mxu0 %v48
    %v215 = vpop.f32.mrf.mxu0
    %v216 = vadd.f32 %v193, %v215
    %217 = vmatmul.f32.gmra.mxu0 %v49
    %v218 = vpop.f32.mrf.mxu0
    %v219 = vadd.f32 %v193, %v218
    %220 = vmatmul.f32.gmra.mxu0 %v50
    %v221 = vpop.f32.mrf.mxu0
    %v222 = vadd.f32 %v193, %v221
    %223 = vmatmul.f32.gmra.mxu0 %v51
    %v224 = vpop.f32.mrf.mxu0
    %v225 = vadd.f32 %v193, %v224
    %226 = vmatmul.f32.gmra.mxu0 %v52
    %v227 = vpop.f32.mrf.mxu0
    %v228 = vadd.f32 %v193, %v227
    %229 = vmatmul.f32.gmra.mxu0 %v53
    %v230 = vpop.f32.mrf.mxu0
    %v231 = vadd.f32 %v193, %v230
    %232 = vmatmul.f32.gmra.mxu0 %v54
    %v233 = vpop.f32.mrf.mxu0
    %v234 = vadd.f32 %v193, %v233
    %235 = vmatmul.f32.gmra.mxu0 %v55
    %v236 = vpop.f32.mrf.mxu0
    %v237 = vadd.f32 %v193, %v236
    %238 = vmatmul.f32.gmra.mxu0 %v56
    %v239 = vpop.f32.mrf.mxu0
    %v240 = vadd.f32 %v193, %v239
    %241 = vmatmul.f32.gmra.mxu0 %v57
    %v242 = vpop.f32.mrf.mxu0
    %v243 = vadd.f32 %v193, %v242
    %244 = vmatmul.f32.gmra.mxu0 %v58
    %v245 = vpop.f32.mrf.mxu0
    %v246 = vadd.f32 %v193, %v245
    %247 = vmatmul.f32.gmra.mxu0 %v59
    %v248 = vpop.f32.mrf.mxu0
    %v249 = vadd.f32 %v193, %v248
    %250 = vmatmul.f32.gmra.mxu0 %v60
    %v251 = vpop.f32.mrf.mxu0
    %v252 = vadd.f32 %v193, %v251
    %253 = vmatmul.f32.gmra.mxu0 %v61
    %v254 = vpop.f32.mrf.mxu0
    %v255 = vadd.f32 %v193, %v254
    %256 = vmatmul.f32.gmra.mxu0 %v62
    %v257 = vpop.f32.mrf.mxu0
    %v258 = vadd.f32 %v193, %v257
    %259 = vmatmul.f32.gmra.mxu0 %v63
    %v260 = vpop.f32.mrf.mxu0
    %v261 = vadd.f32 %v193, %v260
    %262 = vmatmul.f32.gmra.mxu0 %v64
    %v263 = vpop.f32.mrf.mxu0
    %v264 = vadd.f32 %v193, %v263
    %265 = vmatmul.f32.gmra.mxu0 %v65
    %v266 = vpop.f32.mrf.mxu0
    %v267 = vadd.f32 %v193, %v266
    %268 = vmatmul.f32.gmra.mxu0 %v66
    %v269 = vpop.f32.mrf.mxu0
    %v270 = vadd.f32 %v193, %v269
    %271 = vmatmul.f32.gmra.mxu0 %v67
    %v272 = vpop.f32.mrf.mxu0
    %v273 = vadd.f32 %v193, %v272
    %274 = vmatmul.f32.gmra.mxu0 %v68
    %v275 = vpop.f32.mrf.mxu0
    %v276 = vadd.f32 %v193, %v275
    %277 = vmatmul.f32.gmra.mxu0 %v69
    %v278 = vpop.f32.mrf.mxu0
    %v279 = vadd.f32 %v193, %v278
    %280 = vmatmul.f32.gmra.mxu0 %v70
    %v281 = vpop.f32.mrf.mxu0
    %v282 = vadd.f32 %v193, %v281
    %283 = vmatmul.f32.gmra.mxu0 %v71
    %v284 = vpop.f32.mrf.mxu0
    %v285 = vadd.f32 %v193, %v284
    %286 = vmatmul.f32.gmra.mxu0 %v72
    %v287 = vpop.f32.mrf.mxu0
    %v288 = vadd.f32 %v193, %v287
    %289 = vmatmul.f32.gmra.mxu0 %v73
    %v290 = vpop.f32.mrf.mxu0
    %v291 = vadd.f32 %v193, %v290
    %292 = vmatmul.f32.gmra.mxu0 %v74
    %v293 = vpop.f32.mrf.mxu0
    %v294 = vadd.f32 %v193, %v293
    %295 = vmatmul.f32.gmra.mxu0 %v75
    %v296 = vpop.f32.mrf.mxu0
    %v297 = vadd.f32 %v193, %v296
    %298 = vmatmul.f32.gmra.mxu0 %v76
    %v299 = vpop.f32.mrf.mxu0
    %v300 = vadd.f32 %v193, %v299
    %301 = vmatmul.f32.gmra.mxu0 %v77
    %v302 = vpop.f32.mrf.mxu0
    %v303 = vadd.f32 %v193, %v302
    %304 = vmatmul.f32.gmra.mxu0 %v78
    %v305 = vpop.f32.mrf.mxu0
    %v306 = vadd.f32 %v193, %v305
    %307 = vmatmul.f32.gmra.mxu0 %v79
    %v308 = vpop.f32.mrf.mxu0
    %v309 = vadd.f32 %v193, %v308
    %310 = vmatmul.f32.gmra.mxu0 %v80
    %v311 = vpop.f32.mrf.mxu0
    %v312 = vadd.f32 %v193, %v311
    %313 = vmatmul.f32.gmra.mxu0 %v81
    %v314 = vpop.f32.mrf.mxu0
    %v315 = vadd.f32 %v193, %v314
    %316 = vmatmul.f32.gmra.mxu0 %v82
    %v317 = vpop.f32.mrf.mxu0
    %v318 = vadd.f32 %v193, %v317
    %319 = vmatmul.f32.gmra.mxu0 %v83
    %v320 = vpop.f32.mrf.mxu0
    %v321 = vadd.f32 %v193, %v320
    %322 = vmatmul.f32.gmra.mxu0 %v84
    %v323 = vpop.f32.mrf.mxu0
    %v324 = vadd.f32 %v193, %v323
    %325 = vmatmul.f32.gmra.mxu0 %v85
    %v326 = vpop.f32.mrf.mxu0
    %v327 = vadd.f32 %v193, %v326
    %328 = vmatmul.f32.gmra.mxu0 %v86
    %v329 = vpop.f32.mrf.mxu0
    %v330 = vadd.f32 %v193, %v329
    %331 = vmatmul.f32.gmra.mxu0 %v87
    %v332 = vpop.f32.mrf.mxu0
    %v333 = vadd.f32 %v193, %v332
    %334 = vmatmul.f32.gmra.mxu0 %v88
    %v335 = vpop.f32.mrf.mxu0
    %v336 = vadd.f32 %v193, %v335
    %337 = vmatmul.f32.gmra.mxu0 %v89
    %v338 = vpop.f32.mrf.mxu0
    %v339 = vadd.f32 %v193, %v338
    %340 = vmatmul.f32.gmra.mxu0 %v90
    %v341 = vpop.f32.mrf.mxu0
    %v342 = vadd.f32 %v193, %v341
    %343 = vmatmul.f32.gmra.mxu0 %v91
    %v344 = vpop.f32.mrf.mxu0
    %v345 = vadd.f32 %v193, %v344
    %346 = vmatmul.f32.gmra.mxu0 %v92
    %v347 = vpop.f32.mrf.mxu0
    %v348 = vadd.f32 %v193, %v347
    %349 = vmatmul.f32.gmra.mxu0 %v93
    %v350 = vpop.f32.mrf.mxu0
    %v351 = vadd.f32 %v193, %v350
    %352 = vmatmul.f32.gmra.mxu0 %v94
    %v353 = vpop.f32.mrf.mxu0
    %v354 = vadd.f32 %v193, %v353
    %355 = vmatmul.f32.gmra.mxu0 %v95
    %v356 = vpop.f32.mrf.mxu0
    %v357 = vadd.f32 %v193, %v356
    %358 = vmatmul.f32.gmra.mxu0 %v96
    %v359 = vpop.f32.mrf.mxu0
    %v360 = vadd.f32 %v193, %v359
    %361 = vmatmul.f32.gmra.mxu0 %v97
    %v362 = vpop.f32.mrf.mxu0
    %v363 = vadd.f32 %v193, %v362
    %364 = vmatmul.f32.gmra.mxu0 %v98
    %v365 = vpop.f32.mrf.mxu0
    %v366 = vadd.f32 %v193, %v365
    %367 = vmatmul.f32.gmra.mxu0 %v99
    %v368 = vpop.f32.mrf.mxu0
    %v369 = vadd.f32 %v193, %v368
    %370 = vmatmul.f32.gmra.mxu0 %v100
    %v371 = vpop.f32.mrf.mxu0
    %v372 = vadd.f32 %v193, %v371
    %373 = vmatmul.f32.gmra.mxu0 %v101
    %v374 = vpop.f32.mrf.mxu0
    %v375 = vadd.f32 %v193, %v374
    %376 = vmatmul.f32.gmra.mxu0 %v102
    %v377 = vpop.f32.mrf.mxu0
    %v378 = vadd.f32 %v193, %v377
    %379 = vmatmul.f32.gmra.mxu0 %v103
    %v380 = vpop.f32.mrf.mxu0
    %v381 = vadd.f32 %v193, %v380
    %382 = vmatmul.f32.gmra.mxu0 %v104
    %v383 = vpop.f32.mrf.mxu0
    %v384 = vadd.f32 %v193, %v383
    %385 = vmatmul.f32.gmra.mxu0 %v105
    %v386 = vpop.f32.mrf.mxu0
    %v387 = vadd.f32 %v193, %v386
    %388 = vmatmul.f32.gmra.mxu0 %v106
    %v389 = vpop.f32.mrf.mxu0
    %v390 = vadd.f32 %v193, %v389
    %391 = vmatmul.f32.gmra.mxu0 %v107
    %v392 = vpop.f32.mrf.mxu0
    %v393 = vadd.f32 %v193, %v392
    %394 = vmatmul.f32.gmra.mxu0 %v108
    %v395 = vpop.f32.mrf.mxu0
    %v396 = vadd.f32 %v193, %v395
    %397 = vmatmul.f32.gmra.mxu0 %v109
    %v398 = vpop.f32.mrf.mxu0
    %v399 = vadd.f32 %v193, %v398
    %400 = vmatmul.f32.gmra.mxu0 %v110
    %v401 = vpop.f32.mrf.mxu0
    %v402 = vadd.f32 %v193, %v401
    %403 = vmatmul.f32.gmra.mxu0 %v111
    %v404 = vpop.f32.mrf.mxu0
    %v405 = vadd.f32 %v193, %v404
    %406 = vmatmul.f32.gmra.mxu0 %v112
    %v407 = vpop.f32.mrf.mxu0
    %v408 = vadd.f32 %v193, %v407
    %409 = vmatmul.f32.gmra.mxu0 %v113
    %v410 = vpop.f32.mrf.mxu0
    %v411 = vadd.f32 %v193, %v410
    %412 = vmatmul.f32.gmra.mxu0 %v114
    %v413 = vpop.f32.mrf.mxu0
    %v414 = vadd.f32 %v193, %v413
    %415 = vmatmul.f32.gmra.mxu0 %v115
    %v416 = vpop.f32.mrf.mxu0
    %v417 = vadd.f32 %v193, %v416
    %418 = vmatmul.f32.gmra.mxu0 %v116
    %v419 = vpop.f32.mrf.mxu0
    %v420 = vadd.f32 %v193, %v419
    %421 = vmatmul.f32.gmra.mxu0 %v117
    %v422 = vpop.f32.mrf.mxu0
    %v423 = vadd.f32 %v193, %v422
    %424 = vmatmul.f32.gmra.mxu0 %v118
    %v425 = vpop.f32.mrf.mxu0
    %v426 = vadd.f32 %v193, %v425
    %427 = vmatmul.f32.gmra.mxu0 %v119
    %v428 = vpop.f32.mrf.mxu0
    %v429 = vadd.f32 %v193, %v428
    %430 = vmatmul.f32.gmra.mxu0 %v120
    %v431 = vpop.f32.mrf.mxu0
    %v432 = vadd.f32 %v193, %v431
    %433 = vmatmul.f32.gmra.mxu0 %v121
    %v434 = vpop.f32.mrf.mxu0
    %v435 = vadd.f32 %v193, %v434
    %436 = vmatmul.f32.gmra.mxu0 %v122
    %v437 = vpop.f32.mrf.mxu0
    %v438 = vadd.f32 %v193, %v437
    %439 = vmatmul.f32.gmra.mxu0 %v123
    %v440 = vpop.f32.mrf.mxu0
    %v441 = vadd.f32 %v193, %v440
    %442 = vmatmul.f32.gmra.mxu0 %v124
    %v443 = vpop.f32.mrf.mxu0
    %v444 = vadd.f32 %v193, %v443
    %445 = vmatmul.f32.gmra.mxu0 %v125
    %v446 = vpop.f32.mrf.mxu0
    %v447 = vadd.f32 %v193, %v446
    %448 = vmatmul.f32.gmra.mxu0 %v126
    %v449 = vpop.f32.mrf.mxu0
    %v450 = vadd.f32 %v193, %v449
    %451 = vmatmul.f32.gmra.mxu0 %v127
    %v452 = vpop.f32.mrf.mxu0
    %v453 = vadd.f32 %v193, %v452
    %454 = vmatmul.f32.gmra.mxu0 %v128
    %v455 = vpop.f32.mrf.mxu0
    %v456 = vadd.f32 %v193, %v455
    %457 = vmatmul.f32.gmra.mxu0 %v129
    %v458 = vpop.f32.mrf.mxu0
    %v459 = vadd.f32 %v193, %v458
    %460 = vmatmul.f32.gmra.mxu0 %v130
    %v461 = vpop.f32.mrf.mxu0
    %v462 = vadd.f32 %v193, %v461
    %463 = vmatmul.f32.gmra.mxu0 %v131
    %v464 = vpop.f32.mrf.mxu0
    %v465 = vadd.f32 %v193, %v464
    %466 = vmatmul.f32.gmra.mxu0 %v132
    %v467 = vpop.f32.mrf.mxu0
    %v468 = vadd.f32 %v193, %v467
    %469 = vmatmul.f32.gmra.mxu0 %v133
    %v470 = vpop.f32.mrf.mxu0
    %v471 = vadd.f32 %v193, %v470
    %472 = vmatmul.f32.gmra.mxu0 %v134
    %v473 = vpop.f32.mrf.mxu0
    %v474 = vadd.f32 %v193, %v473
    %475 = vmatmul.f32.gmra.mxu0 %v135
    %v476 = vpop.f32.mrf.mxu0
    %v477 = vadd.f32 %v193, %v476
    %478 = vmatmul.f32.gmra.mxu0 %v136
    %v479 = vpop.f32.mrf.mxu0
    %v480 = vadd.f32 %v193, %v479
    %481 = vmatmul.f32.gmra.mxu0 %v137
    %v482 = vpop.f32.mrf.mxu0
    %v483 = vadd.f32 %v193, %v482
    %484 = vmatmul.f32.gmra.mxu0 %v138
    %v485 = vpop.f32.mrf.mxu0
    %v486 = vadd.f32 %v193, %v485
    %487 = vmatmul.f32.gmra.mxu0 %v139
    %v488 = vpop.f32.mrf.mxu0
    %v489 = vadd.f32 %v193, %v488
    %490 = vmatmul.f32.gmra.mxu0 %v140
    %v491 = vpop.f32.mrf.mxu0
    %v492 = vadd.f32 %v193, %v491
    %493 = vmatmul.f32.gmra.mxu0 %v141
    %v494 = vpop.f32.mrf.mxu0
    %v495 = vadd.f32 %v193, %v494
    %496 = vmatmul.f32.gmra.mxu0 %v142
    %v497 = vpop.f32.mrf.mxu0
    %v498 = vadd.f32 %v193, %v497
    %499 = vmatmul.f32.gmra.mxu0 %v143
    %v500 = vpop.f32.mrf.mxu0
    %v501 = vadd.f32 %v193, %v500
    %502 = vmatmul.f32.gmra.mxu0 %v144
    %v503 = vpop.f32.mrf.mxu0
    %v504 = vadd.f32 %v193, %v503
    %505 = vmatmul.f32.gmra.mxu0 %v145
    %v506 = vpop.f32.mrf.mxu0
    %v507 = vadd.f32 %v193, %v506
    %508 = vmatmul.f32.gmra.mxu0 %v146
    %v509 = vpop.f32.mrf.mxu0
    %v510 = vadd.f32 %v193, %v509
    %511 = vmatmul.f32.gmra.mxu0 %v147
    %v512 = vpop.f32.mrf.mxu0
    %v513 = vadd.f32 %v193, %v512
    %514 = vmatmul.f32.gmra.mxu0 %v148
    %v515 = vpop.f32.mrf.mxu0
    %v516 = vadd.f32 %v193, %v515
    %517 = vmatmul.f32.gmra.mxu0 %v149
    %v518 = vpop.f32.mrf.mxu0
    %v519 = vadd.f32 %v193, %v518
    %520 = vmatmul.f32.gmra.mxu0 %v150
    %v521 = vpop.f32.mrf.mxu0
    %v522 = vadd.f32 %v193, %v521
    %523 = vmatmul.f32.gmra.mxu0 %v151
    %v524 = vpop.f32.mrf.mxu0
    %v525 = vadd.f32 %v193, %v524
    %526 = vmatmul.f32.gmra.mxu0 %v152
    %v527 = vpop.f32.mrf.mxu0
    %v528 = vadd.f32 %v193, %v527
    %529 = vmatmul.f32.gmra.mxu0 %v153
    %v530 = vpop.f32.mrf.mxu0
    %v531 = vadd.f32 %v193, %v530
    %532 = vmatmul.f32.gmra.mxu0 %v154
    %v533 = vpop.f32.mrf.mxu0
    %v534 = vadd.f32 %v193, %v533
    %535 = vmatmul.f32.gmra.mxu0 %v155
    %v536 = vpop.f32.mrf.mxu0
    %v537 = vadd.f32 %v193, %v536
    %538 = vmatmul.f32.gmra.mxu0 %v156
    %v539 = vpop.f32.mrf.mxu0
    %v540 = vadd.f32 %v193, %v539
    %541 = vmatmul.f32.gmra.mxu0 %v157
    %v542 = vpop.f32.mrf.mxu0
    %v543 = vadd.f32 %v193, %v542
    %544 = vmatmul.f32.gmra.mxu0 %v158
    %v545 = vpop.f32.mrf.mxu0
    %v546 = vadd.f32 %v193, %v545
    %547 = vmatmul.f32.gmra.mxu0 %v159
    %v548 = vpop.f32.mrf.mxu0
    %v549 = vadd.f32 %v193, %v548
    %550 = vmatmul.f32.gmra.mxu0 %v160
    %v551 = vpop.f32.mrf.mxu0
    %v552 = vadd.f32 %v193, %v551
    %553 = vmatmul.f32.gmra.mxu0 %v161
    %v554 = vpop.f32.mrf.mxu0
    %v555 = vadd.f32 %v193, %v554
    %556 = vmatmul.f32.gmra.mxu0 %v162
    %v557 = vpop.f32.mrf.mxu0
    %v558 = vadd.f32 %v193, %v557
    %559 = vmatmul.f32.gmra.mxu0 %v163
    %v560 = vpop.f32.mrf.mxu0
    %v561 = vadd.f32 %v193, %v560
    %562 = vmatmul.f32.gmra.mxu0 %v164
    %v563 = vpop.f32.mrf.mxu0
    %v564 = vadd.f32 %v193, %v563
    %565 = vmatmul.f32.gmra.mxu0 %v165
    %v566 = vpop.f32.mrf.mxu0
    %v567 = vadd.f32 %v193, %v566
    %568 = vmatmul.f32.gmra.mxu0 %v166
    %v569 = vpop.f32.mrf.mxu0
    %v570 = vadd.f32 %v193, %v569
    %571 = vmatmul.f32.gmra.mxu0 %v167
    %v572 = vpop.f32.mrf.mxu0
    %v573 = vadd.f32 %v193, %v572
    %574 = vmatmul.f32.gmra.mxu0 %v168
    %v575 = vpop.f32.mrf.mxu0
    %v576 = vadd.f32 %v193, %v575
    %577 = vmatmul.f32.gmra.mxu0 %v169
    %v578 = vpop.f32.mrf.mxu0
    %v579 = vadd.f32 %v193, %v578
    %580 = vmatmul.f32.gmra.mxu0 %v170
    %v581 = vpop.f32.mrf.mxu0
    %v582 = vadd.f32 %v193, %v581
    %583 = vmatmul.f32.gmra.mxu0 %v171
    %v584 = vpop.f32.mrf.mxu0
    %v585 = vadd.f32 %v193, %v584
    %586 = vmatmul.f32.gmra.mxu0 %v172
    %v587 = vpop.f32.mrf.mxu0
    %v588 = vadd.f32 %v193, %v587
    %589 = vmatmul.f32.gmra.mxu0 %v173
    %v590 = vpop.f32.mrf.mxu0
    %v591 = vadd.f32 %v193, %v590
    %592 = vmatmul.f32.gmra.mxu0 %v174
    %v593 = vpop.f32.mrf.mxu0
    %v594 = vadd.f32 %v193, %v593
    %595 = vdwg.mxu0
    %v596 = vmax.f32 %v213, 0.0
    %v597 = vmax.f32 %v216, 0.0
    %v598 = vmax.f32 %v219, 0.0
    %v599 = vmax.f32 %v222, 0.0
    %v600 = vmax.f32 %v225, 0.0
    %v601 = vmax.f32 %v228, 0.0
    %v602 = vmax.f32 %v231, 0.0
    %v603 = vmax.f32 %v234, 0.0
    %v604 = vmax.f32 %v237, 0.0
    %v605 = vmax.f32 %v240, 0.0
    %v606 = vmax.f32 %v243, 0.0
    %v607 = vmax.f32 %v246, 0.0
    %v608 = vmax.f32 %v249, 0.0
    %v609 = vmax.f32 %v252, 0.0
    %v610 = vmax.f32 %v255, 0.0
    %v611 = vmax.f32 %v258, 0.0
    %v612 = vmax.f32 %v261, 0.0
    %v613 = vmax.f32 %v264, 0.0
    %v614 = vmax.f32 %v267, 0.0
    %v615 = vmax.f32 %v270, 0.0
    %v616 = vmax.f32 %v273, 0.0
    %v617 = vmax.f32 %v276, 0.0
    %v618 = vmax.f32 %v279, 0.0
    %v619 = vmax.f32 %v282, 0.0
    %v620 = vmax.f32 %v285, 0.0
    %v621 = vmax.f32 %v288, 0.0
    %v622 = vmax.f32 %v291, 0.0
    %v623 = vmax.f32 %v294, 0.0
    %v624 = vmax.f32 %v297, 0.0
    %v625 = vmax.f32 %v300, 0.0
    %v626 = vmax.f32 %v303, 0.0
    %v627 = vmax.f32 %v306, 0.0
    %v628 = vmax.f32 %v309, 0.0
    %v629 = vmax.f32 %v312, 0.0
    %v630 = vmax.f32 %v315, 0.0
    %v631 = vmax.f32 %v318, 0.0
    %v632 = vmax.f32 %v321, 0.0
    %v633 = vmax.f32 %v324, 0.0
    %v634 = vmax.f32 %v327, 0.0
    %v635 = vmax.f32 %v330, 0.0
    %v636 = vmax.f32 %v333, 0.0
    %v637 = vmax.f32 %v336, 0.0
    %v638 = vmax.f32 %v339, 0.0
    %v639 = vmax.f32 %v342, 0.0
    %v640 = vmax.f32 %v345, 0.0
    %v641 = vmax.f32 %v348, 0.0
    %v642 = vmax.f32 %v351, 0.0
    %v643 = vmax.f32 %v354, 0.0
    %v644 = vmax.f32 %v357, 0.0
    %v645 = vmax.f32 %v360, 0.0
    %v646 = vmax.f32 %v363, 0.0
    %v647 = vmax.f32 %v366, 0.0
    %v648 = vmax.f32 %v369, 0.0
    %v649 = vmax.f32 %v372, 0.0
    %v650 = vmax.f32 %v375, 0.0
    %v651 = vmax.f32 %v378, 0.0
    %v652 = vmax.f32 %v381, 0.0
    %v653 = vmax.f32 %v384, 0.0
    %v654 = vmax.f32 %v387, 0.0
    %v655 = vmax.f32 %v390, 0.0
    %v656 = vmax.f32 %v393, 0.0
    %v657 = vmax.f32 %v396, 0.0
    %v658 = vmax.f32 %v399, 0.0
    %v659 = vmax.f32 %v402, 0.0
    %v660 = vmax.f32 %v405, 0.0
    %v661 = vmax.f32 %v408, 0.0
    %v662 = vmax.f32 %v411, 0.0
    %v663 = vmax.f32 %v414, 0.0
    %v664 = vmax.f32 %v417, 0.0
    %v665 = vmax.f32 %v420, 0.0
    %v666 = vmax.f32 %v423, 0.0
    %v667 = vmax.f32 %v426, 0.0
    %v668 = vmax.f32 %v429, 0.0
    %v669 = vmax.f32 %v432, 0.0
    %v670 = vmax.f32 %v435, 0.0
    %v671 = vmax.f32 %v438, 0.0
    %v672 = vmax.f32 %v441, 0.0
    %v673 = vmax.f32 %v444, 0.0
    %v674 = vmax.f32 %v447, 0.0
    %v675 = vmax.f32 %v450, 0.0
    %v676 = vmax.f32 %v453, 0.0
    %v677 = vmax.f32 %v456, 0.0
    %v678 = vmax.f32 %v459, 0.0
    %v679 = vmax.f32 %v462, 0.0
    %v680 = vmax.f32 %v465, 0.0
    %v681 = vmax.f32 %v468, 0.0
    %v682 = vmax.f32 %v471, 0.0
    %v683 = vmax.f32 %v474, 0.0
    %v684 = vmax.f32 %v477, 0.0
    %v685 = vmax.f32 %v480, 0.0
    %v686 = vmax.f32 %v483, 0.0
    %v687 = vmax.f32 %v486, 0.0
    %v688 = vmax.f32 %v489, 0.0
    %v689 = vmax.f32 %v492, 0.0
    %v690 = vmax.f32 %v495, 0.0
    %v691 = vmax.f32 %v498, 0.0
    %v692 = vmax.f32 %v501, 0.0
    %v693 = vmax.f32 %v504, 0.0
    %v694 = vmax.f32 %v507, 0.0
    %v695 = vmax.f32 %v510, 0.0
    %v696 = vmax.f32 %v513, 0.0
    %v697 = vmax.f32 %v516, 0.0
    %v698 = vmax.f32 %v519, 0.0
    %v699 = vmax.f32 %v522, 0.0
    %v700 = vmax.f32 %v525, 0.0
    %v701 = vmax.f32 %v528, 0.0
    %v702 = vmax.f32 %v531, 0.0
    %v703 = vmax.f32 %v534, 0.0
    %v704 = vmax.f32 %v537, 0.0
    %v705 = vmax.f32 %v540, 0.0
    %v706 = vmax.f32 %v543, 0.0
    %v707 = vmax.f32 %v546, 0.0
    %v708 = vmax.f32 %v549, 0.0
    %v709 = vmax.f32 %v552, 0.0
    %v710 = vmax.f32 %v555, 0.0
    %v711 = vmax.f32 %v558, 0.0
    %v712 = vmax.f32 %v561, 0.0
    %v713 = vmax.f32 %v564, 0.0
    %v714 = vmax.f32 %v567, 0.0
    %v715 = vmax.f32 %v570, 0.0
    %v716 = vmax.f32 %v573, 0.0
    %v717 = vmax.f32 %v576, 0.0
    %v718 = vmax.f32 %v579, 0.0
    %v719 = vmax.f32 %v582, 0.0
    %v720 = vmax.f32 %v585, 0.0
    %v721 = vmax.f32 %v588, 0.0
    %v722 = vmax.f32 %v591, 0.0
    %v723 = vmax.f32 %v594, 0.0
    %v724 = vadd.f32 %v47, %v596
    %v725 = vadd.f32 %v48, %v597
    %v726 = vadd.f32 %v49, %v598
    %v727 = vadd.f32 %v50, %v599
    %v728 = vadd.f32 %v51, %v600
    %v729 = vadd.f32 %v52, %v601
    %v730 = vadd.f32 %v53, %v602
    %v731 = vadd.f32 %v54, %v603
    %v732 = vadd.f32 %v55, %v604
    %v733 = vadd.f32 %v56, %v605
    %v734 = vadd.f32 %v57, %v606
    %v735 = vadd.f32 %v58, %v607
    %v736 = vadd.f32 %v59, %v608
    %v737 = vadd.f32 %v60, %v609
    %v738 = vadd.f32 %v61, %v610
    %v739 = vadd.f32 %v62, %v611
    %v740 = vadd.f32 %v63, %v612
    %v741 = vadd.f32 %v64, %v613
    %v742 = vadd.f32 %v65, %v614
    %v743 = vadd.f32 %v66, %v615
    %v744 = vadd.f32 %v67, %v616
    %v745 = vadd.f32 %v68, %v617
    %v746 = vadd.f32 %v69, %v618
    %v747 = vadd.f32 %v70, %v619
    %v748 = vadd.f32 %v71, %v620
    %v749 = vadd.f32 %v72, %v621
    %v750 = vadd.f32 %v73, %v622
    %v751 = vadd.f32 %v74, %v623
    %v752 = vadd.f32 %v75, %v624
    %v753 = vadd.f32 %v76, %v625
    %v754 = vadd.f32 %v77, %v626
    %v755 = vadd.f32 %v78, %v627
    %v756 = vadd.f32 %v79, %v628
    %v757 = vadd.f32 %v80, %v629
    %v758 = vadd.f32 %v81, %v630
    %v759 = vadd.f32 %v82, %v631
    %v760 = vadd.f32 %v83, %v632
    %v761 = vadd.f32 %v84, %v633
    %v762 = vadd.f32 %v85, %v634
    %v763 = vadd.f32 %v86, %v635
    %v764 = vadd.f32 %v87, %v636
    %v765 = vadd.f32 %v88, %v637
    %v766 = vadd.f32 %v89, %v638
    %v767 = vadd.f32 %v90, %v639
    %v768 = vadd.f32 %v91, %v640
    %v769 = vadd.f32 %v92, %v641
    %v770 = vadd.f32 %v93, %v642
    %v771 = vadd.f32 %v94, %v643
    %v772 = vadd.f32 %v95, %v644
    %v773 = vadd.f32 %v96, %v645
    %v774 = vadd.f32 %v97, %v646
    %v775 = vadd.f32 %v98, %v647
    %v776 = vadd.f32 %v99, %v648
    %v777 = vadd.f32 %v100, %v649
    %v778 = vadd.f32 %v101, %v650
    %v779 = vadd.f32 %v102, %v651
    %v780 = vadd.f32 %v103, %v652
    %v781 = vadd.f32 %v104, %v653
    %v782 = vadd.f32 %v105, %v654
    %v783 = vadd.f32 %v106, %v655
    %v784 = vadd.f32 %v107, %v656
    %v785 = vadd.f32 %v108, %v657
    %v786 = vadd.f32 %v109, %v658
    %v787 = vadd.f32 %v110, %v659
    %v788 = vadd.f32 %v111, %v660
    %v789 = vadd.f32 %v112, %v661
    %v790 = vadd.f32 %v113, %v662
    %v791 = vadd.f32 %v114, %v663
    %v792 = vadd.f32 %v115, %v664
    %v793 = vadd.f32 %v116, %v665
    %v794 = vadd.f32 %v117, %v666
    %v795 = vadd.f32 %v118, %v667
    %v796 = vadd.f32 %v119, %v668
    %v797 = vadd.f32 %v120, %v669
    %v798 = vadd.f32 %v121, %v670
    %v799 = vadd.f32 %v122, %v671
    %v800 = vadd.f32 %v123, %v672
    %v801 = vadd.f32 %v124, %v673
    %v802 = vadd.f32 %v125, %v674
    %v803 = vadd.f32 %v126, %v675
    %v804 = vadd.f32 %v127, %v676
    %v805 = vadd.f32 %v128, %v677
    %v806 = vadd.f32 %v129, %v678
    %v807 = vadd.f32 %v130, %v679
    %v808 = vadd.f32 %v131, %v680
    %v809 = vadd.f32 %v132, %v681
    %v810 = vadd.f32 %v133, %v682
    %v811 = vadd.f32 %v134, %v683
    %v812 = vadd.f32 %v135, %v684
    %v813 = vadd.f32 %v136, %v685
    %v814 = vadd.f32 %v137, %v686
    %v815 = vadd.f32 %v138, %v687
    %v816 = vadd.f32 %v139, %v688
    %v817 = vadd.f32 %v140, %v689
    %v818 = vadd.f32 %v141, %v690
    %v819 = vadd.f32 %v142, %v691
    %v820 = vadd.f32 %v143, %v692
    %v821 = vadd.f32 %v144, %v693
    %v822 = vadd.f32 %v145, %v694
    %v823 = vadd.f32 %v146, %v695
    %v824 = vadd.f32 %v147, %v696
    %v825 = vadd.f32 %v148, %v697
    %v826 = vadd.f32 %v149, %v698
    %v827 = vadd.f32 %v150, %v699
    %v828 = vadd.f32 %v151, %v700
    %v829 = vadd.f32 %v152, %v701
    %v830 = vadd.f32 %v153, %v702
    %v831 = vadd.f32 %v154, %v703
    %v832 = vadd.f32 %v155, %v704
    %v833 = vadd.f32 %v156, %v705
    %v834 = vadd.f32 %v157, %v706
    %v835 = vadd.f32 %v158, %v707
    %v836 = vadd.f32 %v159, %v708
    %v837 = vadd.f32 %v160, %v709
    %v838 = vadd.f32 %v161, %v710
    %v839 = vadd.f32 %v162, %v711
    %v840 = vadd.f32 %v163, %v712
    %v841 = vadd.f32 %v164, %v713
    %v842 = vadd.f32 %v165, %v714
    %v843 = vadd.f32 %v166, %v715
    %v844 = vadd.f32 %v167, %v716
    %v845 = vadd.f32 %v168, %v717
    %v846 = vadd.f32 %v169, %v718
    %v847 = vadd.f32 %v170, %v719
    %v848 = vadd.f32 %v171, %v720
    %v849 = vadd.f32 %v172, %v721
    %v850 = vadd.f32 %v173, %v722
    %v851 = vadd.f32 %v174, %v723
    %852 = vst [vmem:[#allocation7] sm:$0xff] %v724
    %853 = vst [vmem:[#allocation7 + $0x8] sm:$0xff] %v725
    %854 = vst [vmem:[#allocation7 + $0x10] sm:$0xff] %v726
    %855 = vst [vmem:[#allocation7 + $0x18] sm:$0xff] %v727
    %856 = vst [vmem:[#allocation7 + $0x20] sm:$0xff] %v728
    %857 = vst [vmem:[#allocation7 + $0x28] sm:$0xff] %v729
    %858 = vst [vmem:[#allocation7 + $0x30] sm:$0xff] %v730
    %859 = vst [vmem:[#allocation7 + $0x38] sm:$0xff] %v731
    %860 = vst [vmem:[#allocation7 + $0x40] sm:$0xff] %v732
    %861 = vst [vmem:[#allocation7 + $0x48] sm:$0xff] %v733
    %862 = vst [vmem:[#allocation7 + $0x50] sm:$0xff] %v734
    %863 = vst [vmem:[#allocation7 + $0x58] sm:$0xff] %v735
    %864 = vst [vmem:[#allocation7 + $0x60] sm:$0xff] %v736
    %865 = vst [vmem:[#allocation7 + $0x68] sm:$0xff] %v737
    %866 = vst [vmem:[#allocation7 + $0x70] sm:$0xff] %v738
    %867 = vst [vmem:[#allocation7 + $0x78] sm:$0xff] %v739
    %868 = vst [vmem:[#allocation7 + $0x80] sm:$0xff] %v740
    %869 = vst [vmem:[#allocation7 + $0x88] sm:$0xff] %v741
    %870 = vst [vmem:[#allocation7 + $0x90] sm:$0xff] %v742
    %871 = vst [vmem:[#allocation7 + $0x98] sm:$0xff] %v743
    %872 = vst [vmem:[#allocation7 + $0xa0] sm:$0xff] %v744
    %873 = vst [vmem:[#allocation7 + $0xa8] sm:$0xff] %v745
    %874 = vst [vmem:[#allocation7 + $0xb0] sm:$0xff] %v746
    %875 = vst [vmem:[#allocation7 + $0xb8] sm:$0xff] %v747
    %876 = vst [vmem:[#allocation7 + $0xc0] sm:$0xff] %v748
    %877 = vst [vmem:[#allocation7 + $0xc8] sm:$0xff] %v749
    %878 = vst [vmem:[#allocation7 + $0xd0] sm:$0xff] %v750
    %879 = vst [vmem:[#allocation7 + $0xd8] sm:$0xff] %v751
    %880 = vst [vmem:[#allocation7 + $0xe0] sm:$0xff] %v752
    %881 = vst [vmem:[#allocation7 + $0xe8] sm:$0xff] %v753
    %882 = vst [vmem:[#allocation7 + $0xf0] sm:$0xff] %v754
    %883 = vst [vmem:[#allocation7 + $0xf8] sm:$0xff] %v755
    %884 = vst [vmem:[#allocation7 + $0x100] sm:$0xff] %v756
    %885 = vst [vmem:[#allocation7 + $0x108] sm:$0xff] %v757
    %886 = vst [vmem:[#allocation7 + $0x110] sm:$0xff] %v758
    %887 = vst [vmem:[#allocation7 + $0x118] sm:$0xff] %v759
    %888 = vst [vmem:[#allocation7 + $0x120] sm:$0xff] %v760
    %889 = vst [vmem:[#allocation7 + $0x128] sm:$0xff] %v761
    %890 = vst [vmem:[#allocation7 + $0x130] sm:$0xff] %v762
    %891 = vst [vmem:[#allocation7 + $0x138] sm:$0xff] %v763
    %892 = vst [vmem:[#allocation7 + $0x140] sm:$0xff] %v764
    %893 = vst [vmem:[#allocation7 + $0x148] sm:$0xff] %v765
    %894 = vst [vmem:[#allocation7 + $0x150] sm:$0xff] %v766
    %895 = vst [vmem:[#allocation7 + $0x158] sm:$0xff] %v767
    %896 = vst [vmem:[#allocation7 + $0x160] sm:$0xff] %v768
    %897 = vst [vmem:[#allocation7 + $0x168] sm:$0xff] %v769
    %898 = vst [vmem:[#allocation7 + $0x170] sm:$0xff] %v770
    %899 = vst [vmem:[#allocation7 + $0x178] sm:$0xff] %v771
    %900 = vst [vmem:[#allocation7 + $0x180] sm:$0xff] %v772
    %901 = vst [vmem:[#allocation7 + $0x188] sm:$0xff] %v773
    %902 = vst [vmem:[#allocation7 + $0x190] sm:$0xff] %v774
    %903 = vst [vmem:[#allocation7 + $0x198] sm:$0xff] %v775
    %904 = vst [vmem:[#allocation7 + $0x1a0] sm:$0xff] %v776
    %905 = vst [vmem:[#allocation7 + $0x1a8] sm:$0xff] %v777
    %906 = vst [vmem:[#allocation7 + $0x1b0] sm:$0xff] %v778
    %907 = vst [vmem:[#allocation7 + $0x1b8] sm:$0xff] %v779
    %908 = vst [vmem:[#allocation7 + $0x1c0] sm:$0xff] %v780
    %909 = vst [vmem:[#allocation7 + $0x1c8] sm:$0xff] %v781
    %910 = vst [vmem:[#allocation7 + $0x1d0] sm:$0xff] %v782
    %911 = vst [vmem:[#allocation7 + $0x1d8] sm:$0xff] %v783
    %912 = vst [vmem:[#allocation7 + $0x1e0] sm:$0xff] %v784
    %913 = vst [vmem:[#allocation7 + $0x1e8] sm:$0xff] %v785
    %914 = vst [vmem:[#allocation7 + $0x1f0] sm:$0xff] %v786
    %915 = vst [vmem:[#allocation7 + $0x1f8] sm:$0xff] %v787
    %916 = vst [vmem:[#allocation7 + $0x200] sm:$0xff] %v788
    %917 = vst [vmem:[#allocation7 + $0x208] sm:$0xff] %v789
    %918 = vst [vmem:[#allocation7 + $0x210] sm:$0xff] %v790
    %919 = vst [vmem:[#allocation7 + $0x218] sm:$0xff] %v791
    %920 = vst [vmem:[#allocation7 + $0x220] sm:$0xff] %v792
    %921 = vst [vmem:[#allocation7 + $0x228] sm:$0xff] %v793
    %922 = vst [vmem:[#allocation7 + $0x230] sm:$0xff] %v794
    %923 = vst [vmem:[#allocation7 + $0x238] sm:$0xff] %v795
    %924 = vst [vmem:[#allocation7 + $0x240] sm:$0xff] %v796
    %925 = vst [vmem:[#allocation7 + $0x248] sm:$0xff] %v797
    %926 = vst [vmem:[#allocation7 + $0x250] sm:$0xff] %v798
    %927 = vst [vmem:[#allocation7 + $0x258] sm:$0xff] %v799
    %928 = vst [vmem:[#allocation7 + $0x260] sm:$0xff] %v800
    %929 = vst [vmem:[#allocation7 + $0x268] sm:$0xff] %v801
    %930 = vst [vmem:[#allocation7 + $0x270] sm:$0xff] %v802
    %931 = vst [vmem:[#allocation7 + $0x278] sm:$0xff] %v803
    %932 = vst [vmem:[#allocation7 + $0x280] sm:$0xff] %v804
    %933 = vst [vmem:[#allocation7 + $0x288] sm:$0xff] %v805
    %934 = vst [vmem:[#allocation7 + $0x290] sm:$0xff] %v806
    %935 = vst [vmem:[#allocation7 + $0x298] sm:$0xff] %v807
    %936 = vst [vmem:[#allocation7 + $0x2a0] sm:$0xff] %v808
    %937 = vst [vmem:[#allocation7 + $0x2a8] sm:$0xff] %v809
    %938 = vst [vmem:[#allocation7 + $0x2b0] sm:$0xff] %v810
    %939 = vst [vmem:[#allocation7 + $0x2b8] sm:$0xff] %v811
    %940 = vst [vmem:[#allocation7 + $0x2c0] sm:$0xff] %v812
    %941 = vst [vmem:[#allocation7 + $0x2c8] sm:$0xff] %v813
    %942 = vst [vmem:[#allocation7 + $0x2d0] sm:$0xff] %v814
    %943 = vst [vmem:[#allocation7 + $0x2d8] sm:$0xff] %v815
    %944 = vst [vmem:[#allocation7 + $0x2e0] sm:$0xff] %v816
    %945 = vst [vmem:[#allocation7 + $0x2e8] sm:$0xff] %v817
    %946 = vst [vmem:[#allocation7 + $0x2f0] sm:$0xff] %v818
    %947 = vst [vmem:[#allocation7 + $0x2f8] sm:$0xff] %v819
    %948 = vst [vmem:[#allocation7 + $0x300] sm:$0xff] %v820
    %949 = vst [vmem:[#allocation7 + $0x308] sm:$0xff] %v821
    %950 = vst [vmem:[#allocation7 + $0x310] sm:$0xff] %v822
    %951 = vst [vmem:[#allocation7 + $0x318] sm:$0xff] %v823
    %952 = vst [vmem:[#allocation7 + $0x320] sm:$0xff] %v824
    %953 = vst [vmem:[#allocation7 + $0x328] sm:$0xff] %v825
    %954 = vst [vmem:[#allocation7 + $0x330] sm:$0xff] %v826
    %955 = vst [vmem:[#allocation7 + $0x338] sm:$0xff] %v827
    %956 = vst [vmem:[#allocation7 + $0x340] sm:$0xff] %v828
    %957 = vst [vmem:[#allocation7 + $0x348] sm:$0xff] %v829
    %958 = vst [vmem:[#allocation7 + $0x350] sm:$0xff] %v830
    %959 = vst [vmem:[#allocation7 + $0x358] sm:$0xff] %v831
    %960 = vst [vmem:[#allocation7 + $0x360] sm:$0xff] %v832
    %961 = vst [vmem:[#allocation7 + $0x368] sm:$0xff] %v833
    %962 = vst [vmem:[#allocation7 + $0x370] sm:$0xff] %v834
    %963 = vst [vmem:[#allocation7 + $0x378] sm:$0xff] %v835
    %964 = vst [vmem:[#allocation7 + $0x380] sm:$0xff] %v836
    %965 = vst [vmem:[#allocation7 + $0x388] sm:$0xff] %v837
    %966 = vst [vmem:[#allocation7 + $0x390] sm:$0xff] %v838
    %967 = vst [vmem:[#allocation7 + $0x398] sm:$0xff] %v839
    %968 = vst [vmem:[#allocation7 + $0x3a0] sm:$0xff] %v840
    %969 = vst [vmem:[#allocation7 + $0x3a8] sm:$0xff] %v841
    %970 = vst [vmem:[#allocation7 + $0x3b0] sm:$0xff] %v842
    %971 = vst [vmem:[#allocation7 + $0x3b8] sm:$0xff] %v843
    %972 = vst [vmem:[#allocation7 + $0x3c0] sm:$0xff] %v844
    %973 = vst [vmem:[#allocation7 + $0x3c8] sm:$0xff] %v845
    %974 = vst [vmem:[#allocation7 + $0x3d0] sm:$0xff] %v846
    %975 = vst [vmem:[#allocation7 + $0x3d8] sm:$0xff] %v847
    %976 = vst [vmem:[#allocation7 + $0x3e0] sm:$0xff] %v848
    %977 = vst [vmem:[#allocation7 + $0x3e8] sm:$0xff] %v849
    %978 = vst [vmem:[#allocation7 + $0x3f0] sm:$0xff] %v850
    %979 = vst [vmem:[#allocation7 + $0x3f8] sm:$0xff] %v851
    // Predicated region
    $region22: #{tpu_custom_call.1} parent=1 // pred_check
      _
    $region23: #{tpu_custom_call.1} parent=1 // pred_check_branch
      %981 = sbr.rel (0) target = $region25
    $region24: #{tpu_custom_call.1} parent=1 // pred_region
      %983 = vsyncadd [#allocation4], 384
      %s984 = sshll.u32 [#allocation7], 4
      %s985 = int_to_ptr.vmem [resolvable:$true] %s984
      %s986 = sshll.u32 %s3, 4
      %s987 = int_to_ptr.hbm [resolvable:$true] %s986
      %992 = dma.vmem_to_hbm [thread:$0]  %s985, 16000, %s987, [#allocation4], 128, 128, 8
    $region25: #{tpu_custom_call.1} parent=1 // pred_fallthru
      _
    // Predicated region
    $region26: #{tpu_custom_call.1} parent=1 // pred_check
      _
    $region27: #{tpu_custom_call.1} parent=1 // pred_check_branch
      %994 = sbr.rel (0) target = $region29
    $region28: #{tpu_custom_call.1} parent=1 // pred_region
      %996 = dma.done [#allocation4], 16384
    $region29: #{tpu_custom_call.1} parent=1 // pred_fallthru
      _
    %997 = vsyncpa [#allocation3], 1
    %998 = vsyncpa [#allocation6], 1
    %999 = vsyncpa [#allocation4], 1

</llo_original>
